<compile_context>
chip_gen: v6e
topology: v6e:2x2x1
jax: 0.10.0
libtpu: 0.0.40
codegen_flags: <defaults>
</compile_context>

<pallas_src>
import functools
import math

import jax
import jax.numpy as jnp
from jax import lax
from jax.experimental import pallas as pl
from jax.experimental.pallas import tpu as pltpu


# Re-sweep per chip: 32 MiB is safe on v5e/v6e (128 MiB VMEM) and v7x (64 MiB).
VMEM_LIMIT_BYTES = 32 * 1024 * 1024
NEG_INF = -1e30  # large finite negative: avoids exp(-inf - -inf) = NaN


# ----------------------------------------------------------------------------
# Stacked linear projection kernel:  y[g] = x[g] @ W[g] + b[g]
#   x: (G, M, Cin), W: (G, Cin, Cout), b: (G, 1, Cout)
# M is tiled (software-pipelined, "parallel"); G batches independent
# projections (used to fuse the K and V projections into one call).
# ----------------------------------------------------------------------------
def _linear_kernel(x_ref, w_ref, b_ref, o_ref):
    # Native-dtype operands into the MXU, f32 accumulation.
    acc = jnp.dot(x_ref[0], w_ref[0], preferred_element_type=jnp.float32)
    o_ref[0] = (acc + b_ref[0]).astype(o_ref.dtype)


def linear_stacked(x, w, b, *, tile_m=256):
    G, M, Cin = x.shape
    Cout = w.shape[-1]
    bm = M if M <= tile_m else tile_m
    grid = (G, pl.cdiv(M, bm))
    return pl.pallas_call(
        _linear_kernel,
        out_shape=jax.ShapeDtypeStruct((G, M, Cout), x.dtype),
        grid=grid,
        in_specs=[
            pl.BlockSpec((1, bm, Cin), lambda g, m: (g, m, 0)),
            pl.BlockSpec((1, Cin, Cout), lambda g, m: (g, 0, 0)),
            pl.BlockSpec((1, 1, Cout), lambda g, m: (g, 0, 0)),
        ],
        out_specs=pl.BlockSpec((1, bm, Cout), lambda g, m: (g, m, 0)),
        compiler_params=pltpu.CompilerParams(
            dimension_semantics=("parallel", "parallel"),
            vmem_limit_bytes=VMEM_LIMIT_BYTES,
        ),
    )(x, w, b.reshape(G, 1, Cout))


# ----------------------------------------------------------------------------
# Flash-style multi-head attention kernel.
#   grid = (B, num_kv_blocks); one batch element (all heads) per b-step.
#   q_ref:    (1, Lq, H*D)     native dtype
#   k_ref:    (1, Bk, H*D)     native dtype (one KV block)
#   v_ref:    (1, Bk, H*D)
#   bias_ref: (1, Lq, Bk)      f32 additive mask bias (optional)
#   o_ref:    (1, Lq, H*D)     written at the last KV step (lane-dense)
#   scratch:  acc (H, Lq, D) f32, m (H, Lq, 1) f32, l (H, Lq, 1) f32
# ----------------------------------------------------------------------------
def _attn_kernel(q_ref, k_ref, v_ref, *rest,
                 head_num, head_dim, inv_temp, has_bias):
    if has_bias:
        bias_ref, o_ref, acc_ref, m_ref, l_ref = rest
    else:
        bias_ref = None
        o_ref, acc_ref, m_ref, l_ref = rest

    kb = pl.program_id(1)

    @pl.when(kb == 0)
    def _init():
        m_ref[...] = jnp.full_like(m_ref, NEG_INF)
        l_ref[...] = jnp.zeros_like(l_ref)
        acc_ref[...] = jnp.zeros_like(acc_ref)

    D = head_dim
    q_all = q_ref[0]                       # (Lq, H*D) native dtype
    k_all = k_ref[0]                       # (Bk, H*D)
    v_all = v_ref[0]                       # (Bk, H*D)
    bias = bias_ref[0] if has_bias else None   # (Lq, Bk) f32

    # Static (unrolled) head loop: per-head column slices of the packed layout.
    for h in range(head_num):
        qh = q_all[:, h * D:(h + 1) * D]   # (Lq, D)
        kh = k_all[:, h * D:(h + 1) * D]   # (Bk, D)
        vh = v_all[:, h * D:(h + 1) * D]   # (Bk, D)

        # q @ k^T via dot_general contracting the last dims (no explicit k.T),
        # native-dtype operands, f32 accumulation; fold 1/temperature as a
        # constant multiply instead of a per-element divide.
        s = lax.dot_general(
            qh, kh, (((1,), (1,)), ((), ())),
            preferred_element_type=jnp.float32) * inv_temp       # (Lq, Bk) f32
        if has_bias:
            s = s + bias

        # Online softmax (f32).
        m_prev = m_ref[h]                                        # (Lq, 1)
        m_new = jnp.maximum(m_prev, jnp.max(s, axis=-1, keepdims=True))
        alpha = jnp.exp(m_prev - m_new)
        p = jnp.exp(s - m_new)                                   # (Lq, Bk) f32
        l_ref[h] = alpha * l_ref[h] + jnp.sum(p, axis=-1, keepdims=True)
        acc_ref[h] = alpha * acc_ref[h] + jnp.dot(
            p.astype(vh.dtype), vh, preferred_element_type=jnp.float32)
        m_ref[h] = m_new

    @pl.when(kb == pl.num_programs(1) - 1)
    def _finalize():
        outs = []
        for h in range(head_num):
            # Normalize once at the accumulator (Lq*D elems per head) instead
            # of over the full (Lq, Lk) probability tile.  Exact reciprocal is
            # negligible here; flip approx=True for bf16 outputs.
            inv_l = pl.reciprocal(l_ref[h], approx=False)        # (Lq, 1)
            outs.append((acc_ref[h] * inv_l).astype(o_ref.dtype))
        # Single full-width, lane-dense store of the packed context.
        o_ref[0] = jnp.concatenate(outs, axis=-1)


def _pick_kv_block(Lk, target=512):
    if Lk <= target:
        return Lk
    for bk in (target, 256, 128):
        if Lk % bk == 0:
            return bk
    return Lk  # TODO(synk): masked tail blocks for ragged Lk not implemented


def attention(qh, kh, vh, bias, *, head_num, head_dim, inv_temp):
    # qh: (B, Lq, H*D), kh/vh: (B, Lk, H*D), bias: (B, Lq, Lk) f32 or None
    B, Lq, HD = qh.shape
    Lk = kh.shape[1]
    block_k = _pick_kv_block(Lk)
    nkb = Lk // block_k
    has_bias = bias is not None

    kernel = functools.partial(
        _attn_kernel, head_num=head_num, head_dim=head_dim,
        inv_temp=inv_temp, has_bias=has_bias)

    in_specs = [
        pl.BlockSpec((1, Lq, HD), lambda b, kb: (b, 0, 0)),
        pl.BlockSpec((1, block_k, HD), lambda b, kb: (b, kb, 0)),
        pl.BlockSpec((1, block_k, HD), lambda b, kb: (b, kb, 0)),
    ]
    args = [qh, kh, vh]
    if has_bias:
        in_specs.append(pl.BlockSpec((1, Lq, block_k), lambda b, kb: (b, 0, kb)))
        args.append(bias)

    return pl.pallas_call(
        kernel,
        out_shape=jax.ShapeDtypeStruct((B, Lq, HD), qh.dtype),
        grid=(B, nkb),
        in_specs=in_specs,
        out_specs=pl.BlockSpec((1, Lq, HD), lambda b, kb: (b, 0, 0)),
        scratch_shapes=[
            pltpu.VMEM((head_num, Lq, head_dim), jnp.float32),  # acc
            pltpu.VMEM((head_num, Lq, 1), jnp.float32),         # m
            pltpu.VMEM((head_num, Lq, 1), jnp.float32),         # l
        ],
        compiler_params=pltpu.CompilerParams(
            dimension_semantics=("parallel", "arbitrary"),
            vmem_limit_bytes=VMEM_LIMIT_BYTES,
        ),
    )(*args)


# ----------------------------------------------------------------------------
# Full MultiHeadAttention forward (glue in plain JAX, hot paths in Pallas).
# ----------------------------------------------------------------------------
def multi_head_attention(q, k, v, params, head_num, mask=None):
    B, Lq, Cq = q.shape
    Lk, Ck = k.shape[1], k.shape[2]
    head_dim = Cq // head_num
    model_dim = head_num * head_dim
    # Matches the SATRN module: temperature = sqrt(head_num * head_dim).
    inv_temp = 1.0 / (float(model_dim) ** 0.5)

    # Q projection (tiled over M).
    qp = linear_stacked(q.reshape(1, B * Lq, Cq),
                        params["wq"][None], params["bq"][None])[0]

    # Fused K|V projections: same M and Cin, one pallas_call with a stacked
    # leading axis (halves launch + weight/bias DMA overhead).
    kv_x = jnp.stack([k.reshape(B * Lk, Ck), v.reshape(B * Lk, Ck)])
    kv_w = jnp.stack([params["wk"], params["wv"]])
    kv_b = jnp.stack([params["bk"], params["bv"]])
    kvp = linear_stacked(kv_x, kv_w, kv_b)
    kp, vp = kvp[0], kvp[1]

    # Keep packed (B, L, H*D) layout — no head transposes through HBM.
    qh = qp.reshape(B, Lq, model_dim)
    kh = kp.reshape(B, Lk, model_dim)
    vh = vp.reshape(B, Lk, model_dim)

    if mask is not None:
        # Additive bias: 0 where visible, -1e30 where masked (no -inf NaNs).
        bias = jnp.where(mask.astype(bool),
                         jnp.float32(NEG_INF), jnp.float32(0.0))
    else:
        bias = None

    ctx = attention(qh, kh, vh, bias,
                    head_num=head_num, head_dim=head_dim, inv_temp=inv_temp)

    out = linear_stacked(ctx.reshape(1, B * Lq, model_dim),
                         params["wo"][None], params["bo"][None])[0]
    # final dropout is identity in eval mode
    return out.reshape(B, Lq, Cq)


# ----------------------------------------------------------------------------
# Pure-JAX reference for verification
# ----------------------------------------------------------------------------
def reference(q, k, v, params, head_num, mask=None):
    B, Lq, Cq = q.shape
    Lk = k.shape[1]
    head_dim = Cq // head_num
    model_dim = head_num * head_dim
    temperature = float(model_dim) ** 0.5

    qp = (q @ params["wq"] + params["bq"]).reshape(B, Lq, head_num, head_dim).transpose(0, 2, 1, 3)
    kp = (k @ params["wk"] + params["bk"]).reshape(B, Lk, head_num, head_dim).transpose(0, 2, 1, 3)
    vp = (v @ params["wv"] + params["bv"]).reshape(B, Lk, head_num, head_dim).transpose(0, 2, 1, 3)

    s = jnp.einsum("bhqd,bhkd->bhqk", qp, kp) / temperature
    if mask is not None:
        s = jnp.where(mask[:, None, :, :], -jnp.inf, s)
    p = jax.nn.softmax(s, axis=-1)
    o = jnp.einsum("bhqk,bhkd->bhqd", p, vp)
    o = o.transpose(0, 2, 1, 3).reshape(B, Lq, model_dim)
    return o @ params["wo"] + params["bo"]


# ----------------------------------------------------------------------------
# Main
# ----------------------------------------------------------------------------
if __name__ == "__main__":
    B = 2
    q_len = 8
    k_len = 16
    q_channels = 32
    k_channels = 24
    head_num = 4
    head_dim = q_channels // head_num
    model_dim = head_num * head_dim

    key = jax.random.PRNGKey(0)
    keys = jax.random.split(key, 12)

    def init_w(kk, cin, cout):
        bound = 1.0 / math.sqrt(cin)
        return jax.random.uniform(kk, (cin, cout), jnp.float32, -bound, bound)

    def init_b(kk, cin, cout):
        bound = 1.0 / math.sqrt(cin)
        return jax.random.uniform(kk, (cout,), jnp.float32, -bound, bound)

    params = {
        "wq": init_w(keys[0], q_channels, model_dim),
        "bq": init_b(keys[1], q_channels, model_dim),
        "wk": init_w(keys[2], k_channels, model_dim),
        "bk": init_b(keys[3], k_channels, model_dim),
        "wv": init_w(keys[4], k_channels, model_dim),
        "bv": init_b(keys[5], k_channels, model_dim),
        "wo": init_w(keys[6], model_dim, q_channels),
        "bo": init_b(keys[7], model_dim, q_channels),
    }

    q = jax.random.normal(keys[8], (B, q_len, q_channels), jnp.float32)
    k = jax.random.normal(keys[9], (B, k_len, k_channels), jnp.float32)
    v = jax.random.normal(keys[10], (B, k_len, k_channels), jnp.float32)

    # Unmasked path.
    out = multi_head_attention(q, k, v, params, head_num, mask=None)
    out = jax.block_until_ready(out)
    ref = reference(q, k, v, params, head_num, mask=None)
    assert out.shape == (B, q_len, q_channels)
    assert jnp.allclose(out, ref, atol=1e-4, rtol=1e-4), "mismatch (no mask)"

    # Masked path (no fully-masked rows, so the -inf reference stays finite).
    mask = jax.random.uniform(keys[11], (B, q_len, k_len)) > 0.7
    mask = mask.at[:, :, 0].set(False)
    out_m = multi_head_attention(q, k, v, params, head_num, mask=mask)
    out_m = jax.block_until_ready(out_m)
    ref_m = reference(q, k, v, params, head_num, mask=mask)
    assert jnp.allclose(out_m, ref_m, atol=1e-4, rtol=1e-4), "mismatch (mask)"

    print("KERNEL_OK")
</pallas_src>

<mosaic_0001>
module attributes {stable_mosaic.version = 11 : i64} {
  func.func @_linear_kernel(%arg0: i32, %arg1: i32, %arg2: memref<1x16x32xf32, #tpu.memory_space<vmem>>, %arg3: memref<1x32x32xf32, #tpu.memory_space<vmem>>, %arg4: memref<1x1x32xf32, #tpu.memory_space<vmem>>, %arg5: memref<1x16x32xf32, #tpu.memory_space<vmem>>) attributes {dimension_semantics = [#tpu.dimension_semantics<parallel>, #tpu.dimension_semantics<parallel>], iteration_bounds = array<i64: 1, 1>, scalar_prefetch = 0 : i64, scratch_operands = 0 : i64, tpu.core_type = #tpu.core_type<tc>, window_params = [{transform_indices = @transform_0, window_bounds = array<i64: 1, 16, 32>}, {transform_indices = @transform_1, window_bounds = array<i64: 1, 32, 32>}, {transform_indices = @transform_2, window_bounds = array<i64: 1, 1, 32>}, {transform_indices = @transform_3, window_bounds = array<i64: 1, 16, 32>}]} {
    %c0 = arith.constant 0 : index
    %c0_0 = arith.constant 0 : index
    %c0_1 = arith.constant 0 : index
    %0 = vector.load %arg2[%c0, %c0_0, %c0_1] : memref<1x16x32xf32, #tpu.memory_space<vmem>>, vector<1x16x32xf32>
    %1 = vector.shape_cast %0 : vector<1x16x32xf32> to vector<16x32xf32>
    %c0_2 = arith.constant 0 : index
    %c0_3 = arith.constant 0 : index
    %c0_4 = arith.constant 0 : index
    %2 = vector.load %arg3[%c0_2, %c0_3, %c0_4] : memref<1x32x32xf32, #tpu.memory_space<vmem>>, vector<1x32x32xf32>
    %3 = vector.shape_cast %2 : vector<1x32x32xf32> to vector<32x32xf32>
    %cst = arith.constant dense<0.000000e+00> : vector<16x32xf32>
    %4 = tpu.matmul %1, %3, %cst {dimension_numbers = #tpu.dot_dimension_numbers<[1], [0], [0], [1], [0, 0, 1, 1], [], []>} : vector<16x32xf32>, vector<32x32xf32>, vector<16x32xf32> -> vector<16x32xf32>
    %c0_5 = arith.constant 0 : index
    %c0_6 = arith.constant 0 : index
    %c0_7 = arith.constant 0 : index
    %5 = vector.load %arg4[%c0_5, %c0_6, %c0_7] : memref<1x1x32xf32, #tpu.memory_space<vmem>>, vector<1x1x32xf32>
    %6 = vector.shape_cast %5 : vector<1x1x32xf32> to vector<1x32xf32>
    %7 = vector.broadcast %6 : vector<1x32xf32> to vector<16x32xf32>
    %8 = arith.addf %4, %7 : vector<16x32xf32>
    %c0_8 = arith.constant 0 : index
    %c0_9 = arith.constant 0 : index
    %c0_10 = arith.constant 0 : index
    %9 = vector.load %arg5[%c0_8, %c0_9, %c0_10] : memref<1x16x32xf32, #tpu.memory_space<vmem>>, vector<1x16x32xf32>
    %10 = vector.shape_cast %9 : vector<1x16x32xf32> to vector<16x32xf32>
    %11 = vector.shape_cast %8 : vector<16x32xf32> to vector<1x16x32xf32>
    tpu.vector_store %arg5[%c0_8, %c0_9, %c0_10], %11 {strides = array<i32>} : memref<1x16x32xf32, #tpu.memory_space<vmem>>, vector<1x16x32xf32>,
    return
  }
  func.func @transform_0(%arg0: i32, %arg1: i32) -> (i32, i32, i32) {
    %c0_i32 = arith.constant 0 : i32
    %c0_i32_0 = arith.constant 0 : i32
    return %arg0, %arg1, %c0_i32 : i32, i32, i32
  }
  func.func @transform_1(%arg0: i32, %arg1: i32) -> (i32, i32, i32) {
    %c0_i32 = arith.constant 0 : i32
    %c0_i32_0 = arith.constant 0 : i32
    %c0_i32_1 = arith.constant 0 : i32
    return %arg0, %c0_i32, %c0_i32_0 : i32, i32, i32
  }
  func.func @transform_2(%arg0: i32, %arg1: i32) -> (i32, i32, i32) {
    %c0_i32 = arith.constant 0 : i32
    %c0_i32_0 = arith.constant 0 : i32
    %c0_i32_1 = arith.constant 0 : i32
    return %arg0, %c0_i32, %c0_i32_0 : i32, i32, i32
  }
  func.func @transform_3(%arg0: i32, %arg1: i32) -> (i32, i32, i32) {
    %c0_i32 = arith.constant 0 : i32
    %c0_i32_0 = arith.constant 0 : i32
    return %arg0, %arg1, %c0_i32 : i32, i32, i32
  }
}

</mosaic_0001>

<llo_original>
// kernel: tpu_custom_call.1
$region0: #{tpu_custom_call.1}
  #allocation0 [shape = 'u32[]', space=smem, size = 0x4, offset = 0x4, fixed_abs, tag = 'smem constant byte address 0x4 - core index']
  #allocation1 [shape = 'u32[144,128]{1,0:T(1,128)}', space=vmem, size = 0x12000, scoped, tag = 'internal scratch']
  %s0 = inlined_call_operand.hbm [shape: f32[1,16,32], index: 0, kind: input, shape index: {}]
  %s1 = inlined_call_operand.hbm [shape: f32[1,32,32], index: 1, kind: input, shape index: {}]
  %s2 = inlined_call_operand.vmem [shape: f32[1,1,32], index: 2, kind: input, shape index: {}]
  %s3 = inlined_call_operand.hbm [shape: f32[1,16,32], index: 3, kind: output, shape index: {}]
  %s4 = sld [smem:[#allocation0]]
  $region30: #{tpu_custom_call.1} parent=0
    _
  %s6 = ssub.s32 1, %s4
  %s7 = scalar_select 0, %s6, %s4
  $region1: #{tpu_custom_call.1} parent=0
    #allocation2 [shape = 'u8[8192]{0}', space=vmem, size = 0x2000, scoped, tag = 'input window, operand 0, single buffered']
    #allocation3 [shape = 's32[1]{0}', space=sflag, size = 0x4, scoped, tag = 'scoped memory for tpu_custom_call.1']
    #allocation4 [shape = 's32[1]{0}', space=sflag, size = 0x4, scoped, tag = 'scoped memory for tpu_custom_call.1']
    #allocation5 [shape = 'u8[16384]{0}', space=vmem, size = 0x4000, scoped, tag = 'input window, operand 1, single buffered']
    #allocation6 [shape = 's32[1]{0}', space=sflag, size = 0x4, scoped, tag = 'scoped memory for tpu_custom_call.1']
    #allocation7 [shape = 'u8[8192]{0}', space=vmem, size = 0x2000, scoped, tag = 'output window, operand 0, single buffered']
    %8 = vsyncpa [#allocation3], 0
    %9 = vsyncpa [#allocation6], 0
    %10 = vsyncpa [#allocation4], 0
    // Predicated region
    $region2: #{tpu_custom_call.1} parent=1 // pred_check
      _
    $region3: #{tpu_custom_call.1} parent=1 // pred_check_branch
      %12 = sbr.rel (0) target = $region5
    $region4: #{tpu_custom_call.1} parent=1 // pred_region
      %s14 = ssub.s32 256, 256
      %15 = vsyncadd [#allocation3], %s14
      %s16 = sshll.u32 [#allocation2], 4
      %s17 = int_to_ptr.vmem [resolvable:$true] %s16
      %22 = dma.hbm_to_vmem [thread:$0]  %s0, 256, %s17, [#allocation3], 128, 128, 8
    $region5: #{tpu_custom_call.1} parent=1 // pred_fallthru
      _
    // Predicated region
    $region6: #{tpu_custom_call.1} parent=1 // pred_check
      _
    $region7: #{tpu_custom_call.1} parent=1 // pred_check_branch
      %24 = sbr.rel (0) target = $region9
    $region8: #{tpu_custom_call.1} parent=1 // pred_region
      %s26 = ssub.s32 512, 512
      %27 = vsyncadd [#allocation6], %s26
      %s28 = sshll.u32 [#allocation5], 4
      %s29 = int_to_ptr.vmem [resolvable:$true] %s28
      %34 = dma.hbm_to_vmem [thread:$0]  %s1, 512, %s29, [#allocation6], 128, 128, 8
    $region9: #{tpu_custom_call.1} parent=1 // pred_fallthru
      _
    // Predicated region
    $region10: #{tpu_custom_call.1} parent=1 // pred_check
      _
    $region11: #{tpu_custom_call.1} parent=1 // pred_check_branch
      %36 = sbr.rel (0) target = $region13
    $region12: #{tpu_custom_call.1} parent=1 // pred_region
      _
    $region13: #{tpu_custom_call.1} parent=1 // pred_fallthru
      _
    // Predicated region
    $region14: #{tpu_custom_call.1} parent=1 // pred_check
      _
    $region15: #{tpu_custom_call.1} parent=1 // pred_check_branch
      %38 = sbr.rel (0) target = $region17
    $region16: #{tpu_custom_call.1} parent=1 // pred_region
      %39 = dma.done [#allocation3], 256
    $region17: #{tpu_custom_call.1} parent=1 // pred_fallthru
      _
    // Predicated region
    $region18: #{tpu_custom_call.1} parent=1 // pred_check
      _
    $region19: #{tpu_custom_call.1} parent=1 // pred_check_branch
      %41 = sbr.rel (0) target = $region21
    $region20: #{tpu_custom_call.1} parent=1 // pred_region
      %42 = dma.done [#allocation6], 512
    $region21: #{tpu_custom_call.1} parent=1 // pred_fallthru
      _
    %v43 = vld [vmem:[#allocation2] sm:$0xff]
    %v44 = vld [vmem:[#allocation2 + $0x8] sm:$0xff]
    %v45 = vld [vmem:[#allocation5] sm:$0xff]
    %v46 = vld [vmem:[#allocation5 + $0x8] sm:$0xff]
    %v47 = vld [vmem:[#allocation5 + $0x10] sm:$0xff]
    %v48 = vld [vmem:[#allocation5 + $0x18] sm:$0xff]
    %v49 = vld [vmem:[%s2] sm:$0x1]
    %v51 = vlaneseq
    %v52 = vshrl.u32 %v51, 7
    %v53 = vsub.s32 0, %v52
    %v54 = vrot.slane %v49, %v53
    %vm56 = vcmask 261120
    %v58 = vsel %vm56, %v43, 0
    %v61 = vsel %vm56, %v44, 0
    %63 = vmatprep.subr.mxu0 0.0
    %64 = vmatpush1.msra.mxu0 0.0
    %65 = vmatprep.subr.mxu0 0.0
    %66 = vmatpush1.msra.mxu0 0.0
    %67 = vmatprep.subr.mxu0 0.0
    %68 = vmatpush1.msra.mxu0 0.0
    %69 = vmatprep.subr.mxu0 0.0
    %70 = vmatpush1.msra.mxu0 0.0
    %71 = vmatprep.subr.mxu0 0.0
    %72 = vmatpush1.msra.mxu0 0.0
    %73 = vmatprep.subr.mxu0 0.0
    %74 = vmatpush1.msra.mxu0 0.0
    %75 = vmatprep.subr.mxu0 0.0
    %76 = vmatpush1.msra.mxu0 0.0
    %77 = vmatprep.subr.mxu0 0.0
    %78 = vmatpush1.msra.mxu0 0.0
    %79 = vmatprep.subr.mxu0 0.0
    %80 = vmatpush1.msra.mxu0 0.0
    %81 = vmatprep.subr.mxu0 0.0
    %82 = vmatpush1.msra.mxu0 0.0
    %83 = vmatprep.subr.mxu0 0.0
    %84 = vmatpush1.msra.mxu0 0.0
    %85 = vmatprep.subr.mxu0 0.0
    %86 = vmatpush1.msra.mxu0 0.0
    %87 = vmatprep.subr.mxu0 0.0
    %88 = vmatpush1.msra.mxu0 %v48
    %89 = vmatprep.subr.mxu0 0.0
    %90 = vmatpush1.msra.mxu0 %v47
    %91 = vmatprep.subr.mxu0 0.0
    %92 = vmatpush1.msra.mxu0 %v46
    %93 = vmatprep.subr.mxu0 0.0
    %94 = vmatpush1.msra.mxu0 %v45
    %95 = vmatprep.subr.mxu0 0.0
    %96 = vmatpush2.msra.mxu0 0.0
    %97 = vmatprep.subr.mxu0 0.0
    %98 = vmatpush2.msra.mxu0 0.0
    %99 = vmatprep.subr.mxu0 0.0
    %100 = vmatpush2.msra.mxu0 0.0
    %101 = vmatprep.subr.mxu0 0.0
    %102 = vmatpush2.msra.mxu0 0.0
    %103 = vmatprep.subr.mxu0 0.0
    %104 = vmatpush2.msra.mxu0 0.0
    %105 = vmatprep.subr.mxu0 0.0
    %106 = vmatpush2.msra.mxu0 0.0
    %107 = vmatprep.subr.mxu0 0.0
    %108 = vmatpush2.msra.mxu0 0.0
    %109 = vmatprep.subr.mxu0 0.0
    %110 = vmatpush2.msra.mxu0 0.0
    %111 = vmatprep.subr.mxu0 0.0
    %112 = vmatpush2.msra.mxu0 0.0
    %113 = vmatprep.subr.mxu0 0.0
    %114 = vmatpush2.msra.mxu0 0.0
    %115 = vmatprep.subr.mxu0 0.0
    %116 = vmatpush2.msra.mxu0 0.0
    %117 = vmatprep.subr.mxu0 0.0
    %118 = vmatpush2.msra.mxu0 0.0
    %119 = vmatprep.subr.mxu0 0.0
    %120 = vmatpush2.msra.mxu0 0.0
    %121 = vmatprep.subr.mxu0 0.0
    %122 = vmatpush2.msra.mxu0 0.0
    %123 = vmatprep.subr.mxu0 0.0
    %124 = vmatpush2.msra.mxu0 0.0
    %125 = vmatprep.subr.mxu0 0.0
    %126 = vmatpush2.msra.mxu0 0.0
    %127 = vmatprep.mubr.f32.mxu0 0.0
    %128 = vmatmul.mubr.f32.gmra.mxu0 %v58
    %v129 = vpop.f32.mrf.mxu0
    %v130 = vadd.f32 %v54, %v129
    %v131 = vpop.f32.mrf.mxu0
    %132 = vmatprep.mubr.f32.mxu0 0.0
    %133 = vmatmul.mubr.f32.gmra.mxu0 %v61
    %v134 = vpop.f32.mrf.mxu0
    %v135 = vadd.f32 %v54, %v134
    %v136 = vpop.f32.mrf.mxu0
    %137 = vdwg.mxu0
    %138 = vst.msk [vmem:[#allocation7] sm:$0xff] %vm56, %v130
    %139 = vst.msk [vmem:[#allocation7 + $0x8] sm:$0xff] %vm56, %v135
    // Predicated region
    $region22: #{tpu_custom_call.1} parent=1 // pred_check
      _
    $region23: #{tpu_custom_call.1} parent=1 // pred_check_branch
      %141 = sbr.rel (0) target = $region25
    $region24: #{tpu_custom_call.1} parent=1 // pred_region
      %s143 = ssub.s32 256, 256
      %144 = vsyncadd [#allocation4], %s143
      %s145 = sshll.u32 [#allocation7], 4
      %s146 = int_to_ptr.vmem [resolvable:$true] %s145
      %151 = dma.vmem_to_hbm [thread:$0]  %s146, 256, %s3, [#allocation4], 128, 128, 8
    $region25: #{tpu_custom_call.1} parent=1 // pred_fallthru
      _
    // Predicated region
    $region26: #{tpu_custom_call.1} parent=1 // pred_check
      _
    $region27: #{tpu_custom_call.1} parent=1 // pred_check_branch
      %153 = sbr.rel (0) target = $region29
    $region28: #{tpu_custom_call.1} parent=1 // pred_region
      %154 = dma.done [#allocation4], 256
    $region29: #{tpu_custom_call.1} parent=1 // pred_fallthru
      _
    %155 = vsyncpa [#allocation3], 1
    %156 = vsyncpa [#allocation6], 1
    %157 = vsyncpa [#allocation4], 1

</llo_original>
